<compile_context>
chip_gen: v7x
topology: tpu7x:2x2x1
jax: 0.10.0
libtpu: 0.0.40
codegen_flags: <defaults>
</compile_context>

<pallas_src>
import jax
import jax.numpy as jnp
from jax.experimental import pallas as pl
from jax.experimental.pallas import tpu as pltpu


def _eltwise_kernel(x_ref, w_ref, o_ref):
    # x_ref: (tb, tn) input tile; w_ref: (1, tn) weight slice, sublane-broadcast (VPU).
    o_ref[...] = x_ref[...] * w_ref[...]


def _round_up(v: int, m: int) -> int:
    return ((v + m - 1) // m) * m


def _vmem_config():
    """(vmem_budget_bytes, vmem_limit_bytes), generation aware but v7x-safe by default."""
    budget, limit = 24 << 20, 32 << 20  # safe on v7x's 64 MiB physical VMEM per TC
    try:
        cap = pltpu.get_tpu_info().vmem_capacity_bytes
        if cap >= (96 << 20):  # v5e / v6e: 128 MiB physical VMEM
            budget, limit = 48 << 20, 64 << 20
    except Exception:
        pass  # unknown platform -> keep conservative (v7x-safe) values
    return budget, limit


def _pick_tiles(B: int, N: int, itemsize: int, vmem_budget_bytes: int):
    """Pick (tb, tn). N is already lane-aligned (multiple of 128) by the wrapper."""
    # Sublane multiple for packed dtypes: 8 for f32, 16 for bf16, 32 for int8.
    sub = max(8, 32 // max(int(itemsize), 1))

    # Live VMEM ~= 2 double-buffered copies of (x tile + out tile) = 4 * tile_bytes,
    # plus one tiny (1, tn) weight row. Target one x-tile at <= budget/4 and <= 8 MiB
    # so per-grid-step overhead is well amortized without risking the VMEM limit.
    tile_target = min(vmem_budget_bytes // 4, 8 << 20)

    # Feature tile: keep the whole (lane-aligned) feature dim when it is modest,
    # otherwise tile it at 4096 lanes so the batch tile stays large independent of N.
    tn = N if N <= 4096 else 4096

    row_bytes = max(tn * itemsize, 1)
    tb = tile_target // row_bytes
    tb = max(sub, (tb // sub) * sub)
    if tb >= B:
        tb = B  # block shape == full array dim is always allowed

    # Guarantee >= 2 total grid steps when the tensor is big enough to split, so both
    # v7x TensorCores get work (and DMA/compute pipelining exists at all).
    if pl.cdiv(B, tb) * pl.cdiv(N, tn) == 1:
        if B >= 2 * sub:
            tb = max(sub, _round_up(pl.cdiv(B, 2), sub))
        elif tn >= 256:
            tn = max(128, _round_up(tn // 2, 128))
    return tb, tn


def _forward(x: jax.Array, weights: jax.Array) -> jax.Array:
    B, N = x.shape
    assert weights.shape == (1, N), f"weights must be (1, {N}), got {weights.shape}"

    # PyTorch-style broadcast dtype promotion (do not silently downcast weights).
    out_dtype = jnp.promote_types(x.dtype, weights.dtype)
    x = x.astype(out_dtype)
    w = weights.astype(out_dtype)
    itemsize = jnp.dtype(out_dtype).itemsize

    # Lane-dense layout: pad feature dim up to a multiple of 128 (unmasked vst; also
    # prevents an over-sized forced tile when N is large and not 128-aligned).
    Np = _round_up(N, 128)
    if Np != N:
        x = jnp.pad(x, ((0, 0), (0, Np - N)))
        w = jnp.pad(w, ((0, 0), (0, Np - N)))

    vmem_budget, vmem_limit = _vmem_config()
    tb, tn = _pick_tiles(B, Np, itemsize, vmem_budget)

    # Feature axis outermost, batch axis innermost (fastest): the weight block index
    # (0, j) is constant across consecutive steps, so its DMA is skipped.
    grid = (pl.cdiv(Np, tn), pl.cdiv(B, tb))

    out = pl.pallas_call(
        _eltwise_kernel,
        out_shape=jax.ShapeDtypeStruct((B, Np), out_dtype),
        grid_spec=pltpu.PrefetchScalarGridSpec(
            num_scalar_prefetch=0,
            grid=grid,
            in_specs=[
                pl.BlockSpec((tb, tn), lambda j, i: (i, j)),  # x tile (batch x feature)
                pl.BlockSpec((1, tn), lambda j, i: (0, j)),   # weight slice, resident per j
            ],
            out_specs=pl.BlockSpec((tb, tn), lambda j, i: (i, j)),
        ),
        compiler_params=pltpu.CompilerParams(
            dimension_semantics=("parallel", "parallel"),
            vmem_limit_bytes=vmem_limit,
        ),
        cost_estimate=pl.CostEstimate(
            flops=B * Np,
            transcendentals=0,
            bytes_accessed=2 * B * Np * itemsize + Np * itemsize,
        ),
    )(x, w)

    if Np != N:
        out = out[:, :N]
    return out


@jax.custom_vjp
def trainable_eltwise(x: jax.Array, weights: jax.Array) -> jax.Array:
    """Forward of TrainableEltwiseLayer: x (B, n) * weights (1, n) -> (B, n)."""
    return _forward(x, weights)


def _trainable_eltwise_fwd(x, weights):
    return _forward(x, weights), (x, weights)


def _trainable_eltwise_bwd(res, g):
    x, w = res
    # d/dx = g * w : exact same broadcast-multiply kernel.
    dx = _forward(g, w).astype(x.dtype)
    # d/dw = sum_batch(g * x).
    # TODO(synk): could be a fused Pallas column-reduction kernel; XLA reduce is fine here.
    dw = jnp.sum(
        g.astype(jnp.float32) * x.astype(jnp.float32), axis=0, keepdims=True
    ).astype(w.dtype)
    return dx, dw


trainable_eltwise.defvjp(_trainable_eltwise_fwd, _trainable_eltwise_bwd)


if __name__ == "__main__":
    key = jax.random.PRNGKey(0)
    kx, kw = jax.random.split(key)

    # Small shapes consistent with the module (n = feature dim).
    B, N = 8, 128
    x = jax.random.normal(kx, (B, N), dtype=jnp.float32)
    # Deterministic init matching nn.Parameter(torch.randn((1, n))) semantics.
    weights = jax.random.normal(kw, (1, N), dtype=jnp.float32)

    out = jax.block_until_ready(trainable_eltwise(x, weights))
    expected = x * weights
    assert out.shape == (B, N)
    assert jnp.allclose(out, expected, atol=1e-6, rtol=1e-6)

    # Unaligned feature dim (exercises the lane-padding path) + gradient sanity check.
    B2, N2 = 16, 96
    x2 = jax.random.normal(kx, (B2, N2), dtype=jnp.float32)
    w2 = jax.random.normal(kw, (1, N2), dtype=jnp.float32)
    out2 = jax.block_until_ready(trainable_eltwise(x2, w2))
    assert jnp.allclose(out2, x2 * w2, atol=1e-6, rtol=1e-6)

    loss = lambda xx, ww: jnp.sum(trainable_eltwise(xx, ww) ** 2)
    gx, gw = jax.grad(loss, argnums=(0, 1))(x2, w2)
    gx, gw = jax.block_until_ready((gx, gw))
    assert jnp.allclose(gx, 2.0 * (x2 * w2) * w2, atol=1e-4, rtol=1e-4)
    assert jnp.allclose(
        gw, jnp.sum(2.0 * (x2 * w2) * x2, axis=0, keepdims=True), atol=1e-4, rtol=1e-4
    )

    print("KERNEL_OK")
</pallas_src>

<mosaic_0001>
module attributes {stable_mosaic.version = 11 : i64} {
  func.func @_eltwise_kernel(%arg0: i32, %arg1: i32, %arg2: memref<8x128xf32, #tpu.memory_space<vmem>>, %arg3: memref<1x128xf32, #tpu.memory_space<vmem>>, %arg4: memref<8x128xf32, #tpu.memory_space<vmem>>) attributes {dimension_semantics = [#tpu.dimension_semantics<parallel>, #tpu.dimension_semantics<parallel>], iteration_bounds = array<i64: 1, 1>, scalar_prefetch = 0 : i64, scratch_operands = 0 : i64, tpu.core_type = #tpu.core_type<tc>, window_params = [{transform_indices = @transform_0, window_bounds = array<i64: 8, 128>}, {transform_indices = @transform_1, window_bounds = array<i64: 1, 128>}, {transform_indices = @transform_2, window_bounds = array<i64: 8, 128>}]} {
    %c0 = arith.constant 0 : index
    %c0_0 = arith.constant 0 : index
    %0 = vector.load %arg2[%c0, %c0_0] : memref<8x128xf32, #tpu.memory_space<vmem>>, vector<8x128xf32>
    %c0_1 = arith.constant 0 : index
    %c0_2 = arith.constant 0 : index
    %1 = vector.load %arg3[%c0_1, %c0_2] : memref<1x128xf32, #tpu.memory_space<vmem>>, vector<1x128xf32>
    %2 = vector.broadcast %1 : vector<1x128xf32> to vector<8x128xf32>
    %3 = arith.mulf %0, %2 : vector<8x128xf32>
    %c0_3 = arith.constant 0 : index
    %c0_4 = arith.constant 0 : index
    %4 = vector.load %arg4[%c0_3, %c0_4] : memref<8x128xf32, #tpu.memory_space<vmem>>, vector<8x128xf32>
    tpu.vector_store %arg4[%c0_3, %c0_4], %3 {strides = array<i32>} : memref<8x128xf32, #tpu.memory_space<vmem>>, vector<8x128xf32>,
    return
  }
  func.func @transform_0(%arg0: i32, %arg1: i32) -> (i32, i32) {
    %c0_i32 = arith.constant 0 : i32
    return %arg1, %arg0 : i32, i32
  }
  func.func @transform_1(%arg0: i32, %arg1: i32) -> (i32, i32) {
    %c0_i32 = arith.constant 0 : i32
    %c0_i32_0 = arith.constant 0 : i32
    return %c0_i32, %arg0 : i32, i32
  }
  func.func @transform_2(%arg0: i32, %arg1: i32) -> (i32, i32) {
    %c0_i32 = arith.constant 0 : i32
    return %arg1, %arg0 : i32, i32
  }
}

</mosaic_0001>

<llo_original>
// kernel: tpu_custom_call.1
$region0: #{tpu_custom_call.1}
  #allocation0 [shape = 'u32[]', space=smem, size = 0x4, offset = 0x4, fixed_abs, tag = 'smem constant byte address 0x4 - core index']
  #allocation1 [shape = 'u32[144,128]{1,0:T(1,128)}', space=vmem, size = 0x12000, scoped, tag = 'internal scratch']
  %s0 = inlined_call_operand.hbm [shape: f32[8,128], index: 0, kind: input, shape index: {}]
  %s1 = inlined_call_operand.vmem [shape: f32[1,128], index: 1, kind: input, shape index: {}]
  %s2 = inlined_call_operand.hbm [shape: f32[8,128], index: 2, kind: output, shape index: {}]
  %s3 = sld [smem:[#allocation0]]
  $region22: #{tpu_custom_call.1} parent=0
    _
  %s5 = ssub.s32 1, %s3
  %s6 = scalar_select 0, %s5, %s3
  $region1: #{tpu_custom_call.1} parent=0
    #allocation2 [shape = 'u8[4096]{0}', space=vmem, size = 0x1000, scoped, tag = 'input window, operand 0, single buffered']
    #allocation3 [shape = 's32[1]{0}', space=sflag, size = 0x4, scoped, tag = 'scoped memory for tpu_custom_call.1']
    #allocation4 [shape = 's32[1]{0}', space=sflag, size = 0x4, scoped, tag = 'scoped memory for tpu_custom_call.1']
    #allocation5 [shape = 'u8[4096]{0}', space=vmem, size = 0x1000, scoped, tag = 'output window, operand 0, single buffered']
    %7 = vsyncpa [#allocation3], 0
    %8 = vsyncpa [#allocation4], 0
    // Predicated region
    $region2: #{tpu_custom_call.1} parent=1 // pred_check
      _
    $region3: #{tpu_custom_call.1} parent=1 // pred_check_branch
      %10 = sbr.rel (0) target = $region5
    $region4: #{tpu_custom_call.1} parent=1 // pred_region
      %s12 = ssub.s32 128, 128
      %13 = vsyncadd [#allocation3], %s12
      %s15 = sshll.u32 [#allocation2], 4
      %s16 = int_to_ptr.vmem [resolvable:$true] %s15
      %18 = dma.hbm_to_vmem [thread:$0]  %s0, 128, %s16, [#allocation3]
    $region5: #{tpu_custom_call.1} parent=1 // pred_fallthru
      _
    // Predicated region
    $region6: #{tpu_custom_call.1} parent=1 // pred_check
      _
    $region7: #{tpu_custom_call.1} parent=1 // pred_check_branch
      %20 = sbr.rel (0) target = $region9
    $region8: #{tpu_custom_call.1} parent=1 // pred_region
      _
    $region9: #{tpu_custom_call.1} parent=1 // pred_fallthru
      _
    // Predicated region
    $region10: #{tpu_custom_call.1} parent=1 // pred_check
      _
    $region11: #{tpu_custom_call.1} parent=1 // pred_check_branch
      %22 = sbr.rel (0) target = $region13
    $region12: #{tpu_custom_call.1} parent=1 // pred_region
      %23 = dma.done [#allocation3], 128
    $region13: #{tpu_custom_call.1} parent=1 // pred_fallthru
      _
    %v24 = vld [vmem:[#allocation2] sm:$0xff]
    %v25 = vld [vmem:[%s1] sm:$0x1]
    %v27 = vlaneseq
    %v28 = vshrl.u32 %v27, 7
    %v29 = vsub.s32 0, %v28
    %v30 = vrot.slane %v25, %v29
    %v32 = vmul.f32 %v24, %v30
    %33 = vst [vmem:[#allocation5] sm:$0xff] %v32
    // Predicated region
    $region14: #{tpu_custom_call.1} parent=1 // pred_check
      _
    $region15: #{tpu_custom_call.1} parent=1 // pred_check_branch
      %35 = sbr.rel (0) target = $region17
    $region16: #{tpu_custom_call.1} parent=1 // pred_region
      %s37 = ssub.s32 128, 128
      %38 = vsyncadd [#allocation4], %s37
      %s40 = sshll.u32 [#allocation5], 4
      %s41 = int_to_ptr.vmem [resolvable:$true] %s40
      %43 = dma.vmem_to_hbm [thread:$0]  %s41, 128, %s2, [#allocation4]
    $region17: #{tpu_custom_call.1} parent=1 // pred_fallthru
      _
    // Predicated region
    $region18: #{tpu_custom_call.1} parent=1 // pred_check
      _
    $region19: #{tpu_custom_call.1} parent=1 // pred_check_branch
      %45 = sbr.rel (0) target = $region21
    $region20: #{tpu_custom_call.1} parent=1 // pred_region
      %46 = dma.done [#allocation4], 128
    $region21: #{tpu_custom_call.1} parent=1 // pred_fallthru
      _
    %47 = vsyncpa [#allocation3], 1
    %48 = vsyncpa [#allocation4], 1

</llo_original>
